<compile_context>
chip_gen: v7x
topology: tpu7x:2x2x1
jax: 0.10.0
libtpu: 0.0.40
codegen_flags: <defaults>
</compile_context>

<pallas_src>
import functools

import jax
import jax.numpy as jnp
from jax import lax
from jax.experimental import pallas as pl
from jax.experimental.pallas import tpu as pltpu


def _round_up(n, m=8):
    return ((n + m - 1) // m) * m


def _slab_layout(D, H, BH, C):
    """Row offsets (all multiples of 8 -> sublane aligned) into the param slab."""
    width = max(H, C)
    off = {}
    r = 0
    off["wih"] = r; r += _round_up(D)     # W_ih^T  : (D, H)
    off["whh"] = r; r += _round_up(H)     # W_hh^T  : (H, H)
    off["b"] = r;   r += 8                # b_ih+b_hh : (1, H)
    off["wfc"] = r; r += _round_up(BH)    # W_fc^T  : (B*H, C)
    off["bfc"] = r; r += 8                # b_fc    : (1, C)
    return off, r, width


def rnn_forward_kernel(x_ref, h0_ref, slab_ref, out_ref, hid_ref,
                       *, D, H, C, off):
    """Full RNN recurrence + Linear(32->5) + LogSoftmax in one invocation.

    Everything (activations + the packed parameter slab, ~15 KB total) lives
    in VMEM; the recurrence is inherently serial, so no grid / pipelining.
    """
    T = x_ref.shape[0]

    # --- static views into the packed parameter slab (one DMA'd input) ---
    wih_t = slab_ref[off["wih"]:off["wih"] + D, :]            # (D, H)
    whh_t = slab_ref[off["whh"]:off["whh"] + H, :]            # (H, H)
    b = slab_ref[off["b"]:off["b"] + 1, :]                    # (1, H)
    wfc_t = slab_ref[off["wfc"]:off["wfc"] + H, :][:, :C]     # (B*H, C), B=1
    bfc = slab_ref[off["bfc"]:off["bfc"] + 1, :][:, :C]       # (1, C)

    # --- hoisted input projection: xW = x @ W_ih^T + (b_ih + b_hh)  (T, H) ---
    xw = jnp.dot(x_ref[...], wih_t, preferred_element_type=jnp.float32) + b

    # --- serial recurrence, h carried in vregs, fully unrolled (T static) ---
    h = h0_ref[...]                                           # (1, H)  (B = 1)
    for t in range(T):
        h = jnp.tanh(
            jnp.dot(h, whh_t, preferred_element_type=jnp.float32)
            + xw[t:t + 1, :])                                 # static slice

    # final hidden state written once
    hid_ref[...] = h

    # --- fcn(hidden.view(1, -1)) : (1, B*H) @ (B*H, 5) + (1, 5) ---
    # B == 1 so h is already the (1, B*H) row-major flatten.
    logits = jnp.dot(h, wfc_t, preferred_element_type=jnp.float32) + bfc

    # --- LogSoftmax(dim=1), numerically stable ---
    m = jnp.max(logits, axis=1, keepdims=True)
    shifted = logits - m
    lse = jnp.log(jnp.sum(jnp.exp(shifted), axis=1, keepdims=True))
    out_ref[...] = shifted - lse


def prepare_params(params):
    """One-time parameter prep: transpose + bias fusion + pack into one slab."""
    H, D = params["W_ih"].shape
    C, BH = params["W_fc"].shape
    off, rows, width = _slab_layout(D, H, BH, C)

    slab = jnp.zeros((rows, width), jnp.float32)
    slab = slab.at[off["wih"]:off["wih"] + D, :H].set(params["W_ih"].T)
    slab = slab.at[off["whh"]:off["whh"] + H, :H].set(params["W_hh"].T)
    slab = slab.at[off["b"], :H].set(params["b_ih"] + params["b_hh"])
    slab = slab.at[off["wfc"]:off["wfc"] + BH, :C].set(params["W_fc"].T)
    slab = slab.at[off["bfc"], :C].set(params["b_fc"])

    return {"slab": slab, "off": off, "D": D, "H": H, "BH": BH, "C": C}


def rnn_forward(x, h0, prepped):
    """Wrapper: shape plumbing + pallas_call (single grid-less invocation)."""
    T, B, D = x.shape
    H, C, BH = prepped["H"], prepped["C"], prepped["BH"]
    assert D == prepped["D"]
    assert B * H == BH, "module requires B*H == 32"
    assert B == 1, "nn.Linear(32,5) on hidden.view(1,-1) forces B == 1"

    # squeeze B=1 -> lane/sublane-friendly (T, D) tile
    x2d = x.reshape(T, D)

    vmem = pl.BlockSpec(memory_space=pltpu.MemorySpace.VMEM)
    kernel = functools.partial(rnn_forward_kernel,
                               D=D, H=H, C=C, off=prepped["off"])

    flops = 2 * T * D * H + 2 * T * H * H + 2 * B * H * C
    bytes_accessed = 4 * (T * D + B * H + prepped["slab"].size + C + B * H)

    out, hid = pl.pallas_call(
        kernel,
        out_shape=(
            jax.ShapeDtypeStruct((1, C), jnp.float32),
            jax.ShapeDtypeStruct((B, H), jnp.float32),
        ),
        in_specs=[vmem, vmem, vmem],
        out_specs=(vmem, vmem),
        cost_estimate=pl.CostEstimate(
            flops=flops,
            transcendentals=T * H + C,
            bytes_accessed=bytes_accessed),
    )(x2d, h0, prepped["slab"])

    # PyTorch returns hidden_state with a leading n_layers axis: (1, B, H)
    return out, hid.reshape(1, B, H)


def rnn_reference(x, h0, params):
    """Pure-JAX reference of the PyTorch forward (for correctness check)."""
    def step(h, x_t):
        h_new = jnp.tanh(x_t @ params["W_ih"].T + params["b_ih"]
                         + h @ params["W_hh"].T + params["b_hh"])
        return h_new, None

    h_final, _ = lax.scan(step, h0, x)
    logits = h_final.reshape(1, -1) @ params["W_fc"].T + params["b_fc"]
    logp = jax.nn.log_softmax(logits, axis=1)
    return logp, h_final.reshape(1, *h_final.shape)


def init_params(key, input_dim, hidden_dim, num_classes=5, fc_in=32):
    """Deterministic init mimicking PyTorch's U(-1/sqrt(fan), 1/sqrt(fan))."""
    ks = jax.random.split(key, 6)
    k_rnn = 1.0 / jnp.sqrt(hidden_dim)
    k_fc = 1.0 / jnp.sqrt(fc_in)
    return {
        "W_ih": jax.random.uniform(ks[0], (hidden_dim, input_dim),
                                   jnp.float32, -k_rnn, k_rnn),
        "W_hh": jax.random.uniform(ks[1], (hidden_dim, hidden_dim),
                                   jnp.float32, -k_rnn, k_rnn),
        "b_ih": jax.random.uniform(ks[2], (hidden_dim,),
                                   jnp.float32, -k_rnn, k_rnn),
        "b_hh": jax.random.uniform(ks[3], (hidden_dim,),
                                   jnp.float32, -k_rnn, k_rnn),
        "W_fc": jax.random.uniform(ks[4], (num_classes, fc_in),
                                   jnp.float32, -k_fc, k_fc),
        "b_fc": jax.random.uniform(ks[5], (num_classes,),
                                   jnp.float32, -k_fc, k_fc),
    }


if __name__ == "__main__":
    # Shapes implied by the module: nn.Linear(32, 5) on hidden.view(1, -1)
    # => batch * hidden_dim == 32  =>  B = 1, H = 32.
    T, B, D, H = 8, 1, 16, 32

    root = jax.random.PRNGKey(0)
    k_x, k_p = jax.random.split(root)
    x = jax.random.normal(k_x, (T, B, D), dtype=jnp.float32)
    h0 = jnp.zeros((B, H), dtype=jnp.float32)  # PyTorch default: zero hidden
    params = init_params(k_p, D, H, num_classes=5, fc_in=B * H)

    # One-time parameter prep (transposes + bias fusion + single packed slab),
    # outside the per-call path.
    prepped = prepare_params(params)

    fwd = jax.jit(functools.partial(rnn_forward, prepped=prepped))
    out, hidden = fwd(x, h0)
    out = jax.block_until_ready(out)
    hidden = jax.block_until_ready(hidden)

    ref_out, ref_hidden = rnn_reference(x, h0, params)
    assert out.shape == (1, 5) and hidden.shape == (1, B, H)
    assert jnp.allclose(out, ref_out, atol=1e-5, rtol=1e-5)
    assert jnp.allclose(hidden, ref_hidden, atol=1e-5, rtol=1e-5)

    print("KERNEL_OK")
</pallas_src>

<mosaic_0001>
module attributes {stable_mosaic.version = 11 : i64} {
  func.func @rnn_forward_kernel(%arg0: memref<8x16xf32, #tpu.memory_space<vmem>>, %arg1: memref<1x32xf32, #tpu.memory_space<vmem>>, %arg2: memref<96x32xf32, #tpu.memory_space<vmem>>, %arg3: memref<1x5xf32, #tpu.memory_space<vmem>>, %arg4: memref<1x32xf32, #tpu.memory_space<vmem>>) attributes {dimension_semantics = [], scalar_prefetch = 0 : i64, scratch_operands = 0 : i64, tpu.core_type = #tpu.core_type<tc>} {
    %c0 = arith.constant 0 : index
    %c0_0 = arith.constant 0 : index
    %0 = vector.load %arg2[%c0, %c0_0] : memref<96x32xf32, #tpu.memory_space<vmem>>, vector<16x32xf32>
    %c16 = arith.constant 16 : index
    %c0_1 = arith.constant 0 : index
    %1 = vector.load %arg2[%c16, %c0_1] : memref<96x32xf32, #tpu.memory_space<vmem>>, vector<32x32xf32>
    %c48 = arith.constant 48 : index
    %c0_2 = arith.constant 0 : index
    %2 = vector.load %arg2[%c48, %c0_2] : memref<96x32xf32, #tpu.memory_space<vmem>>, vector<1x32xf32>
    %c56 = arith.constant 56 : index
    %c0_3 = arith.constant 0 : index
    %3 = vector.load %arg2[%c56, %c0_3] : memref<96x32xf32, #tpu.memory_space<vmem>>, vector<32x32xf32>
    %4 = vector.extract_strided_slice %3 {offsets = [0, 0], sizes = [32, 5], strides = [1, 1]} : vector<32x32xf32> to vector<32x5xf32>
    %c88 = arith.constant 88 : index
    %c0_4 = arith.constant 0 : index
    %5 = vector.load %arg2[%c88, %c0_4] : memref<96x32xf32, #tpu.memory_space<vmem>>, vector<1x32xf32>
    %6 = vector.extract_strided_slice %5 {offsets = [0, 0], sizes = [1, 5], strides = [1, 1]} : vector<1x32xf32> to vector<1x5xf32>
    %c0_5 = arith.constant 0 : index
    %c0_6 = arith.constant 0 : index
    %7 = vector.load %arg0[%c0_5, %c0_6] : memref<8x16xf32, #tpu.memory_space<vmem>>, vector<8x16xf32>
    %cst = arith.constant dense<0.000000e+00> : vector<8x32xf32>
    %8 = tpu.matmul %7, %0, %cst {dimension_numbers = #tpu.dot_dimension_numbers<[1], [0], [0], [1], [0, 0, 1, 1], [], []>} : vector<8x16xf32>, vector<16x32xf32>, vector<8x32xf32> -> vector<8x32xf32>
    %9 = vector.broadcast %2 : vector<1x32xf32> to vector<8x32xf32>
    %10 = arith.addf %8, %9 : vector<8x32xf32>
    %c0_7 = arith.constant 0 : index
    %c0_8 = arith.constant 0 : index
    %11 = vector.load %arg1[%c0_7, %c0_8] : memref<1x32xf32, #tpu.memory_space<vmem>>, vector<1x32xf32>
    %cst_9 = arith.constant dense<0.000000e+00> : vector<1x32xf32>
    %12 = tpu.matmul %11, %1, %cst_9 {dimension_numbers = #tpu.dot_dimension_numbers<[1], [0], [0], [1], [0, 0, 1, 1], [], []>} : vector<1x32xf32>, vector<32x32xf32>, vector<1x32xf32> -> vector<1x32xf32>
    %13 = vector.extract_strided_slice %10 {offsets = [0, 0], sizes = [1, 32], strides = [1, 1]} : vector<8x32xf32> to vector<1x32xf32>
    %14 = arith.addf %12, %13 : vector<1x32xf32>
    %15 = math.tanh %14 : vector<1x32xf32>
    %cst_10 = arith.constant dense<0.000000e+00> : vector<1x32xf32>
    %16 = tpu.matmul %15, %1, %cst_10 {dimension_numbers = #tpu.dot_dimension_numbers<[1], [0], [0], [1], [0, 0, 1, 1], [], []>} : vector<1x32xf32>, vector<32x32xf32>, vector<1x32xf32> -> vector<1x32xf32>
    %17 = vector.extract_strided_slice %10 {offsets = [1, 0], sizes = [1, 32], strides = [1, 1]} : vector<8x32xf32> to vector<1x32xf32>
    %18 = arith.addf %16, %17 : vector<1x32xf32>
    %19 = math.tanh %18 : vector<1x32xf32>
    %cst_11 = arith.constant dense<0.000000e+00> : vector<1x32xf32>
    %20 = tpu.matmul %19, %1, %cst_11 {dimension_numbers = #tpu.dot_dimension_numbers<[1], [0], [0], [1], [0, 0, 1, 1], [], []>} : vector<1x32xf32>, vector<32x32xf32>, vector<1x32xf32> -> vector<1x32xf32>
    %21 = vector.extract_strided_slice %10 {offsets = [2, 0], sizes = [1, 32], strides = [1, 1]} : vector<8x32xf32> to vector<1x32xf32>
    %22 = arith.addf %20, %21 : vector<1x32xf32>
    %23 = math.tanh %22 : vector<1x32xf32>
    %cst_12 = arith.constant dense<0.000000e+00> : vector<1x32xf32>
    %24 = tpu.matmul %23, %1, %cst_12 {dimension_numbers = #tpu.dot_dimension_numbers<[1], [0], [0], [1], [0, 0, 1, 1], [], []>} : vector<1x32xf32>, vector<32x32xf32>, vector<1x32xf32> -> vector<1x32xf32>
    %25 = vector.extract_strided_slice %10 {offsets = [3, 0], sizes = [1, 32], strides = [1, 1]} : vector<8x32xf32> to vector<1x32xf32>
    %26 = arith.addf %24, %25 : vector<1x32xf32>
    %27 = math.tanh %26 : vector<1x32xf32>
    %cst_13 = arith.constant dense<0.000000e+00> : vector<1x32xf32>
    %28 = tpu.matmul %27, %1, %cst_13 {dimension_numbers = #tpu.dot_dimension_numbers<[1], [0], [0], [1], [0, 0, 1, 1], [], []>} : vector<1x32xf32>, vector<32x32xf32>, vector<1x32xf32> -> vector<1x32xf32>
    %29 = vector.extract_strided_slice %10 {offsets = [4, 0], sizes = [1, 32], strides = [1, 1]} : vector<8x32xf32> to vector<1x32xf32>
    %30 = arith.addf %28, %29 : vector<1x32xf32>
    %31 = math.tanh %30 : vector<1x32xf32>
    %cst_14 = arith.constant dense<0.000000e+00> : vector<1x32xf32>
    %32 = tpu.matmul %31, %1, %cst_14 {dimension_numbers = #tpu.dot_dimension_numbers<[1], [0], [0], [1], [0, 0, 1, 1], [], []>} : vector<1x32xf32>, vector<32x32xf32>, vector<1x32xf32> -> vector<1x32xf32>
    %33 = vector.extract_strided_slice %10 {offsets = [5, 0], sizes = [1, 32], strides = [1, 1]} : vector<8x32xf32> to vector<1x32xf32>
    %34 = arith.addf %32, %33 : vector<1x32xf32>
    %35 = math.tanh %34 : vector<1x32xf32>
    %cst_15 = arith.constant dense<0.000000e+00> : vector<1x32xf32>
    %36 = tpu.matmul %35, %1, %cst_15 {dimension_numbers = #tpu.dot_dimension_numbers<[1], [0], [0], [1], [0, 0, 1, 1], [], []>} : vector<1x32xf32>, vector<32x32xf32>, vector<1x32xf32> -> vector<1x32xf32>
    %37 = vector.extract_strided_slice %10 {offsets = [6, 0], sizes = [1, 32], strides = [1, 1]} : vector<8x32xf32> to vector<1x32xf32>
    %38 = arith.addf %36, %37 : vector<1x32xf32>
    %39 = math.tanh %38 : vector<1x32xf32>
    %cst_16 = arith.constant dense<0.000000e+00> : vector<1x32xf32>
    %40 = tpu.matmul %39, %1, %cst_16 {dimension_numbers = #tpu.dot_dimension_numbers<[1], [0], [0], [1], [0, 0, 1, 1], [], []>} : vector<1x32xf32>, vector<32x32xf32>, vector<1x32xf32> -> vector<1x32xf32>
    %41 = vector.extract_strided_slice %10 {offsets = [7, 0], sizes = [1, 32], strides = [1, 1]} : vector<8x32xf32> to vector<1x32xf32>
    %42 = arith.addf %40, %41 : vector<1x32xf32>
    %43 = math.tanh %42 : vector<1x32xf32>
    %c0_17 = arith.constant 0 : index
    %c0_18 = arith.constant 0 : index
    %44 = vector.load %arg4[%c0_17, %c0_18] : memref<1x32xf32, #tpu.memory_space<vmem>>, vector<1x32xf32>
    tpu.vector_store %arg4[%c0_17, %c0_18], %43 {strides = array<i32>} : memref<1x32xf32, #tpu.memory_space<vmem>>, vector<1x32xf32>,
    %cst_19 = arith.constant dense<0.000000e+00> : vector<1x5xf32>
    %45 = tpu.matmul %43, %4, %cst_19 {dimension_numbers = #tpu.dot_dimension_numbers<[1], [0], [0], [1], [0, 0, 1, 1], [], []>} : vector<1x32xf32>, vector<32x5xf32>, vector<1x5xf32> -> vector<1x5xf32>
    %46 = arith.addf %45, %6 : vector<1x5xf32>
    %cst_20 = arith.constant dense<0xFF800000> : vector<1xf32>
    %47 = vector.multi_reduction <maximumf>, %46, %cst_20 [1] : vector<1x5xf32> to vector<1xf32>
    %48 = vector.shape_cast %47 : vector<1xf32> to vector<1x1xf32>
    %49 = vector.broadcast %48 : vector<1x1xf32> to vector<1x5xf32>
    %50 = arith.subf %46, %49 : vector<1x5xf32>
    %51 = math.exp %50 : vector<1x5xf32>
    %cst_21 = arith.constant dense<0.000000e+00> : vector<1xf32>
    %52 = vector.multi_reduction <add>, %51, %cst_21 [1] : vector<1x5xf32> to vector<1xf32>
    %53 = vector.shape_cast %52 : vector<1xf32> to vector<1x1xf32>
    %54 = math.log %53 : vector<1x1xf32>
    %55 = vector.broadcast %54 : vector<1x1xf32> to vector<1x5xf32>
    %56 = arith.subf %50, %55 : vector<1x5xf32>
    %c0_22 = arith.constant 0 : index
    %c0_23 = arith.constant 0 : index
    %57 = vector.load %arg3[%c0_22, %c0_23] : memref<1x5xf32, #tpu.memory_space<vmem>>, vector<1x5xf32>
    tpu.vector_store %arg3[%c0_22, %c0_23], %56 {strides = array<i32>} : memref<1x5xf32, #tpu.memory_space<vmem>>, vector<1x5xf32>,
    return
  }
}

</mosaic_0001>

<llo_original>
// kernel: rnn_forward.1
$region0: #{rnn_forward.1}
  #allocation0 [shape = 'u32[]', space=smem, size = 0x4, offset = 0x4, fixed_abs, tag = 'smem constant byte address 0x4 - core index']
  #allocation1 [shape = 'u32[144,128]{1,0:T(1,128)}', space=vmem, size = 0x12000, scoped, tag = 'internal scratch']
  %s0 = inlined_call_operand.hbm [shape: f32[8,16], index: 0, kind: input, shape index: {}]
  %s1 = inlined_call_operand.vmem [shape: f32[1,32], index: 1, kind: input, shape index: {}]
  %s2 = inlined_call_operand.hbm [shape: f32[96,32], index: 2, kind: input, shape index: {}]
  %s3 = inlined_call_operand.hbm [shape: f32[1,5], index: 3, kind: output, shape index: {0}]
  %s4 = inlined_call_operand.hbm [shape: f32[1,32], index: 4, kind: output, shape index: {1}]
  %5 = xla_tuple %s3, %s4
  %s6 = sld [smem:[#allocation0]]
  $region38: #{rnn_forward.1} parent=0
    _
  %s8 = ssub.s32 1, %s6
  %s9 = scalar_select 0, %s8, %s6
  $region1: #{rnn_forward.1} parent=0
    #allocation2 [shape = 'u8[4096]{0}', space=vmem, size = 0x1000, scoped, tag = 'input window, operand 0, single buffered']
    #allocation3 [shape = 's32[1]{0}', space=sflag, size = 0x4, scoped, tag = 'scoped memory for rnn_forward.1']
    #allocation4 [shape = 's32[1]{0}', space=sflag, size = 0x4, scoped, tag = 'scoped memory for rnn_forward.1']
    #allocation5 [shape = 'u8[49152]{0}', space=vmem, size = 0xc000, scoped, tag = 'input window, operand 2, single buffered']
    #allocation6 [shape = 's32[1]{0}', space=sflag, size = 0x4, scoped, tag = 'scoped memory for rnn_forward.1']
    #allocation7 [shape = 'u8[512]{0}', space=vmem, size = 0x400, scoped, tag = 'output window, operand 0, single buffered']
    #allocation8 [shape = 'u8[512]{0}', space=vmem, size = 0x400, scoped, tag = 'output window, operand 1, single buffered']
    #allocation9 [shape = 's32[1]{0}', space=sflag, size = 0x4, scoped, tag = 'scoped memory for rnn_forward.1']
    %10 = vsyncpa [#allocation3], 0
    %11 = vsyncpa [#allocation6], 0
    %12 = vsyncpa [#allocation4], 0
    %13 = vsyncpa [#allocation9], 0
    // Predicated region
    $region2: #{rnn_forward.1} parent=1 // pred_check
      _
    $region3: #{rnn_forward.1} parent=1 // pred_check_branch
      %15 = sbr.rel (0) target = $region5
    $region4: #{rnn_forward.1} parent=1 // pred_region
      %s17 = ssub.s32 128, 128
      %18 = vsyncadd [#allocation3], %s17
      %s20 = sshll.u32 [#allocation2], 4
      %s21 = int_to_ptr.vmem [resolvable:$true] %s20
      %23 = dma.hbm_to_vmem [thread:$0]  %s0, 128, %s21, [#allocation3]
    $region5: #{rnn_forward.1} parent=1 // pred_fallthru
      _
    // Predicated region
    $region6: #{rnn_forward.1} parent=1 // pred_check
      _
    $region7: #{rnn_forward.1} parent=1 // pred_check_branch
      %25 = sbr.rel (0) target = $region9
    $region8: #{rnn_forward.1} parent=1 // pred_region
      _
    $region9: #{rnn_forward.1} parent=1 // pred_fallthru
      _
    // Predicated region
    $region10: #{rnn_forward.1} parent=1 // pred_check
      _
    $region11: #{rnn_forward.1} parent=1 // pred_check_branch
      %27 = sbr.rel (0) target = $region13
    $region12: #{rnn_forward.1} parent=1 // pred_region
      %s29 = ssub.s32 1536, 1536
      %30 = vsyncadd [#allocation6], %s29
      %s31 = sshll.u32 [#allocation5], 4
      %s32 = int_to_ptr.vmem [resolvable:$true] %s31
      %37 = dma.hbm_to_vmem [thread:$0]  %s2, 1536, %s32, [#allocation6], 128, 128, 8
    $region13: #{rnn_forward.1} parent=1 // pred_fallthru
      _
    // Predicated region
    $region14: #{rnn_forward.1} parent=1 // pred_check
      _
    $region15: #{rnn_forward.1} parent=1 // pred_check_branch
      %39 = sbr.rel (0) target = $region17
    $region16: #{rnn_forward.1} parent=1 // pred_region
      %40 = dma.done [#allocation3], 128
    $region17: #{rnn_forward.1} parent=1 // pred_fallthru
      _
    // Predicated region
    $region18: #{rnn_forward.1} parent=1 // pred_check
      _
    $region19: #{rnn_forward.1} parent=1 // pred_check_branch
      %42 = sbr.rel (0) target = $region21
    $region20: #{rnn_forward.1} parent=1 // pred_region
      %43 = dma.done [#allocation6], 1536
    $region21: #{rnn_forward.1} parent=1 // pred_fallthru
      _
    %v44 = vld [vmem:[#allocation5] sm:$0xff]
    %v45 = vld [vmem:[#allocation5 + $0x8] sm:$0xff]
    %v46 = vld [vmem:[#allocation5 + $0x10] sm:$0xff]
    %v47 = vld [vmem:[#allocation5 + $0x18] sm:$0xff]
    %v48 = vld [vmem:[#allocation5 + $0x20] sm:$0xff]
    %v49 = vld [vmem:[#allocation5 + $0x28] sm:$0xff]
    %v50 = vld [vmem:[#allocation5 + $0x30] sm:$0x1]
    %v51 = vld [vmem:[#allocation5 + $0x38] sm:$0xff]
    %v52 = vld [vmem:[#allocation5 + $0x40] sm:$0xff]
    %v53 = vld [vmem:[#allocation5 + $0x48] sm:$0xff]
    %v54 = vld [vmem:[#allocation5 + $0x50] sm:$0xff]
    %v55 = vld [vmem:[#allocation5 + $0x58] sm:$0x1]
    %v56 = vld [vmem:[#allocation2] sm:$0xff]
    %v57 = vlaneseq
    %v58 = vshrl.u32 %v57, 7
    %v59 = vsub.s32 0, %v58
    %v60 = vrot.slane %v50, %v59
    %vm61 = vcmask 130048
    %v63 = vsel %vm61, %v56, 0
    %65 = vmatprep.subr.mxu0 0.0
    %66 = vmatpush1.msra.mxu0 %v44
    %67 = vmatprep.subr.mxu0 0.0
    %68 = vmatpush1.msra.mxu0 %v45
    %69 = vmatprep.subr.mxu0 0.0
    %70 = vmatpush1.msra.mxu0 0.0
    %71 = vmatprep.subr.mxu0 0.0
    %72 = vmatpush1.msra.mxu0 0.0
    %73 = vmatprep.subr.mxu0 0.0
    %74 = vmatpush1.msra.mxu0 0.0
    %75 = vmatprep.subr.mxu0 0.0
    %76 = vmatpush1.msra.mxu0 0.0
    %77 = vmatprep.subr.mxu0 0.0
    %78 = vmatpush1.msra.mxu0 0.0
    %79 = vmatprep.subr.mxu0 0.0
    %80 = vmatpush1.msra.mxu0 0.0
    %81 = vmatprep.subr.mxu0 0.0
    %82 = vmatpush1.msra.mxu0 0.0
    %83 = vmatprep.subr.mxu0 0.0
    %84 = vmatpush1.msra.mxu0 0.0
    %85 = vmatprep.subr.mxu0 0.0
    %86 = vmatpush1.msra.mxu0 0.0
    %87 = vmatprep.subr.mxu0 0.0
    %88 = vmatpush1.msra.mxu0 0.0
    %89 = vmatprep.subr.mxu0 0.0
    %90 = vmatpush1.msra.mxu0 0.0
    %91 = vmatprep.subr.mxu0 0.0
    %92 = vmatpush1.msra.mxu0 0.0
    %93 = vmatprep.subr.mxu0 0.0
    %94 = vmatpush1.msra.mxu0 0.0
    %95 = vmatprep.subr.mxu0 0.0
    %96 = vmatpush1.msra.mxu0 0.0
    %97 = vmatprep.subr.mxu0 0.0
    %98 = vmatpush1.msra.mxu0 0.0
    %99 = vmatprep.subr.mxu0 0.0
    %100 = vmatpush1.msra.mxu0 0.0
    %101 = vmatprep.subr.mxu0 0.0
    %102 = vmatpush1.msra.mxu0 0.0
    %103 = vmatprep.subr.mxu0 0.0
    %104 = vmatpush1.msra.mxu0 0.0
    %105 = vmatprep.subr.mxu0 0.0
    %106 = vmatpush1.msra.mxu0 0.0
    %107 = vmatprep.subr.mxu0 0.0
    %108 = vmatpush1.msra.mxu0 0.0
    %109 = vmatprep.subr.mxu0 0.0
    %110 = vmatpush1.msra.mxu0 0.0
    %111 = vmatprep.subr.mxu0 0.0
    %112 = vmatpush1.msra.mxu0 0.0
    %113 = vmatprep.subr.mxu0 0.0
    %114 = vmatpush1.msra.mxu0 0.0
    %115 = vmatprep.subr.mxu0 0.0
    %116 = vmatpush1.msra.mxu0 0.0
    %117 = vmatprep.subr.mxu0 0.0
    %118 = vmatpush1.msra.mxu0 0.0
    %119 = vmatprep.subr.mxu0 0.0
    %120 = vmatpush1.msra.mxu0 0.0
    %121 = vmatprep.subr.mxu0 0.0
    %122 = vmatpush1.msra.mxu0 0.0
    %123 = vmatprep.subr.mxu0 0.0
    %124 = vmatpush1.msra.mxu0 0.0
    %125 = vmatprep.subr.mxu0 0.0
    %126 = vmatpush1.msra.mxu0 0.0
    %127 = vmatprep.subr.mxu0 0.0
    %128 = vmatpush1.msra.mxu0 0.0
    %129 = vmatprep.mubr.f32.mxu0 0.0
    %130 = vmatmul.mubr.f32.gmra.mrb[0].mxu0 %v63
    %v131 = vpop.f32.mrb[0].mxu0
    %v132 = vadd.f32 %v60, %v131
    %v133 = vpop.f32.mrb[0].mxu0
    %134 = vdwg.mxu0
    %v135 = vld [vmem:[%s1] sm:$0x1]
    %vm136 = vcmask 261120
    %v138 = vsel %vm136, %v135, 0
    %140 = vmatprep.subr.mxu0 0.0
    %141 = vmatpush1.msra.mxu0 %v46
    %142 = vmatprep.subr.mxu0 0.0
    %143 = vmatpush1.msra.mxu0 %v47
    %144 = vmatprep.subr.mxu0 0.0
    %145 = vmatpush1.msra.mxu0 %v48
    %146 = vmatprep.subr.mxu0 0.0
    %147 = vmatpush1.msra.mxu0 %v49
    %148 = vmatprep.subr.mxu0 0.0
    %149 = vmatpush1.msra.mxu0 0.0
    %150 = vmatprep.subr.mxu0 0.0
    %151 = vmatpush1.msra.mxu0 0.0
    %152 = vmatprep.subr.mxu0 0.0
    %153 = vmatpush1.msra.mxu0 0.0
    %154 = vmatprep.subr.mxu0 0.0
    %155 = vmatpush1.msra.mxu0 0.0
    %156 = vmatprep.subr.mxu0 0.0
    %157 = vmatpush1.msra.mxu0 0.0
    %158 = vmatprep.subr.mxu0 0.0
    %159 = vmatpush1.msra.mxu0 0.0
    %160 = vmatprep.subr.mxu0 0.0
    %161 = vmatpush1.msra.mxu0 0.0
    %162 = vmatprep.subr.mxu0 0.0
    %163 = vmatpush1.msra.mxu0 0.0
    %164 = vmatprep.subr.mxu0 0.0
    %165 = vmatpush1.msra.mxu0 0.0
    %166 = vmatprep.subr.mxu0 0.0
    %167 = vmatpush1.msra.mxu0 0.0
    %168 = vmatprep.subr.mxu0 0.0
    %169 = vmatpush1.msra.mxu0 0.0
    %170 = vmatprep.subr.mxu0 0.0
    %171 = vmatpush1.msra.mxu0 0.0
    %172 = vmatprep.subr.mxu0 0.0
    %173 = vmatpush1.msra.mxu0 0.0
    %174 = vmatprep.subr.mxu0 0.0
    %175 = vmatpush1.msra.mxu0 0.0
    %176 = vmatprep.subr.mxu0 0.0
    %177 = vmatpush1.msra.mxu0 0.0
    %178 = vmatprep.subr.mxu0 0.0
    %179 = vmatpush1.msra.mxu0 0.0
    %180 = vmatprep.subr.mxu0 0.0
    %181 = vmatpush1.msra.mxu0 0.0
    %182 = vmatprep.subr.mxu0 0.0
    %183 = vmatpush1.msra.mxu0 0.0
    %184 = vmatprep.subr.mxu0 0.0
    %185 = vmatpush1.msra.mxu0 0.0
    %186 = vmatprep.subr.mxu0 0.0
    %187 = vmatpush1.msra.mxu0 0.0
    %188 = vmatprep.subr.mxu0 0.0
    %189 = vmatpush1.msra.mxu0 0.0
    %190 = vmatprep.subr.mxu0 0.0
    %191 = vmatpush1.msra.mxu0 0.0
    %192 = vmatprep.subr.mxu0 0.0
    %193 = vmatpush1.msra.mxu0 0.0
    %194 = vmatprep.subr.mxu0 0.0
    %195 = vmatpush1.msra.mxu0 0.0
    %196 = vmatprep.subr.mxu0 0.0
    %197 = vmatpush1.msra.mxu0 0.0
    %198 = vmatprep.subr.mxu0 0.0
    %199 = vmatpush1.msra.mxu0 0.0
    %200 = vmatprep.subr.mxu0 0.0
    %201 = vmatpush1.msra.mxu0 0.0
    %202 = vmatprep.subr.mxu0 0.0
    %203 = vmatpush1.msra.mxu0 0.0
    %204 = vmatprep.mubr.f32.mxu0 0.0
    %205 = vmatmul.mubr.f32.gmra.mrb[0].mxu0 %v138
    %v206 = vpop.f32.mrb[0].mxu0
    %v207 = vadd.f32 %v132, %v206
    %v208 = vpop.f32.mrb[0].mxu0
    %209 = vdwg.mxu0
    %v210 = vtanh.pop %v207
    %v212 = vrot.slane %v132, 1
    %v215 = vsel %vm136, %v210, 0
    %217 = vmatprep.subr.mxu0 0.0
    %218 = vmatpush1.msra.mxu0 %v46
    %219 = vmatprep.subr.mxu0 0.0
    %220 = vmatpush1.msra.mxu0 %v47
    %221 = vmatprep.subr.mxu0 0.0
    %222 = vmatpush1.msra.mxu0 %v48
    %223 = vmatprep.subr.mxu0 0.0
    %224 = vmatpush1.msra.mxu0 %v49
    %225 = vmatprep.subr.mxu0 0.0
    %226 = vmatpush1.msra.mxu0 0.0
    %227 = vmatprep.subr.mxu0 0.0
    %228 = vmatpush1.msra.mxu0 0.0
    %229 = vmatprep.subr.mxu0 0.0
    %230 = vmatpush1.msra.mxu0 0.0
    %231 = vmatprep.subr.mxu0 0.0
    %232 = vmatpush1.msra.mxu0 0.0
    %233 = vmatprep.subr.mxu0 0.0
    %234 = vmatpush1.msra.mxu0 0.0
    %235 = vmatprep.subr.mxu0 0.0
    %236 = vmatpush1.msra.mxu0 0.0
    %237 = vmatprep.subr.mxu0 0.0
    %238 = vmatpush1.msra.mxu0 0.0
    %239 = vmatprep.subr.mxu0 0.0
    %240 = vmatpush1.msra.mxu0 0.0
    %241 = vmatprep.subr.mxu0 0.0
    %242 = vmatpush1.msra.mxu0 0.0
    %243 = vmatprep.subr.mxu0 0.0
    %244 = vmatpush1.msra.mxu0 0.0
    %245 = vmatprep.subr.mxu0 0.0
    %246 = vmatpush1.msra.mxu0 0.0
    %247 = vmatprep.subr.mxu0 0.0
    %248 = vmatpush1.msra.mxu0 0.0
    %249 = vmatprep.subr.mxu0 0.0
    %250 = vmatpush1.msra.mxu0 0.0
    %251 = vmatprep.subr.mxu0 0.0
    %252 = vmatpush1.msra.mxu0 0.0
    %253 = vmatprep.subr.mxu0 0.0
    %254 = vmatpush1.msra.mxu0 0.0
    %255 = vmatprep.subr.mxu0 0.0
    %256 = vmatpush1.msra.mxu0 0.0
    %257 = vmatprep.subr.mxu0 0.0
    %258 = vmatpush1.msra.mxu0 0.0
    %259 = vmatprep.subr.mxu0 0.0
    %260 = vmatpush1.msra.mxu0 0.0
    %261 = vmatprep.subr.mxu0 0.0
    %262 = vmatpush1.msra.mxu0 0.0
    %263 = vmatprep.subr.mxu0 0.0
    %264 = vmatpush1.msra.mxu0 0.0
    %265 = vmatprep.subr.mxu0 0.0
    %266 = vmatpush1.msra.mxu0 0.0
    %267 = vmatprep.subr.mxu0 0.0
    %268 = vmatpush1.msra.mxu0 0.0
    %269 = vmatprep.subr.mxu0 0.0
    %270 = vmatpush1.msra.mxu0 0.0
    %271 = vmatprep.subr.mxu0 0.0
    %272 = vmatpush1.msra.mxu0 0.0
    %273 = vmatprep.subr.mxu0 0.0
    %274 = vmatpush1.msra.mxu0 0.0
    %275 = vmatprep.subr.mxu0 0.0
    %276 = vmatpush1.msra.mxu0 0.0
    %277 = vmatprep.subr.mxu0 0.0
    %278 = vmatpush1.msra.mxu0 0.0
    %279 = vmatprep.subr.mxu0 0.0
    %280 = vmatpush1.msra.mxu0 0.0
    %281 = vmatprep.mubr.f32.mxu0 0.0
    %282 = vmatmul.mubr.f32.gmra.mrb[0].mxu0 %v215
    %v283 = vpop.f32.mrb[0].mxu0
    %v284 = vadd.f32 %v212, %v283
    %v285 = vpop.f32.mrb[0].mxu0
    %286 = vdwg.mxu0
    %v287 = vtanh.pop %v284
    %v288 = vrot.slane %v132, 2
    %v291 = vsel %vm136, %v287, 0
    %293 = vmatprep.subr.mxu0 0.0
    %294 = vmatpush1.msra.mxu0 %v46
    %295 = vmatprep.subr.mxu0 0.0
    %296 = vmatpush1.msra.mxu0 %v47
    %297 = vmatprep.subr.mxu0 0.0
    %298 = vmatpush1.msra.mxu0 %v48
    %299 = vmatprep.subr.mxu0 0.0
    %300 = vmatpush1.msra.mxu0 %v49
    %301 = vmatprep.subr.mxu0 0.0
    %302 = vmatpush1.msra.mxu0 0.0
    %303 = vmatprep.subr.mxu0 0.0
    %304 = vmatpush1.msra.mxu0 0.0
    %305 = vmatprep.subr.mxu0 0.0
    %306 = vmatpush1.msra.mxu0 0.0
    %307 = vmatprep.subr.mxu0 0.0
    %308 = vmatpush1.msra.mxu0 0.0
    %309 = vmatprep.subr.mxu0 0.0
    %310 = vmatpush1.msra.mxu0 0.0
    %311 = vmatprep.subr.mxu0 0.0
    %312 = vmatpush1.msra.mxu0 0.0
    %313 = vmatprep.subr.mxu0 0.0
    %314 = vmatpush1.msra.mxu0 0.0
    %315 = vmatprep.subr.mxu0 0.0
    %316 = vmatpush1.msra.mxu0 0.0
    %317 = vmatprep.subr.mxu0 0.0
    %318 = vmatpush1.msra.mxu0 0.0
    %319 = vmatprep.subr.mxu0 0.0
    %320 = vmatpush1.msra.mxu0 0.0
    %321 = vmatprep.subr.mxu0 0.0
    %322 = vmatpush1.msra.mxu0 0.0
    %323 = vmatprep.subr.mxu0 0.0
    %324 = vmatpush1.msra.mxu0 0.0
    %325 = vmatprep.subr.mxu0 0.0
    %326 = vmatpush1.msra.mxu0 0.0
    %327 = vmatprep.subr.mxu0 0.0
    %328 = vmatpush1.msra.mxu0 0.0
    %329 = vmatprep.subr.mxu0 0.0
    %330 = vmatpush1.msra.mxu0 0.0
    %331 = vmatprep.subr.mxu0 0.0
    %332 = vmatpush1.msra.mxu0 0.0
    %333 = vmatprep.subr.mxu0 0.0
    %334 = vmatpush1.msra.mxu0 0.0
    %335 = vmatprep.subr.mxu0 0.0
    %336 = vmatpush1.msra.mxu0 0.0
    %337 = vmatprep.subr.mxu0 0.0
    %338 = vmatpush1.msra.mxu0 0.0
    %339 = vmatprep.subr.mxu0 0.0
    %340 = vmatpush1.msra.mxu0 0.0
    %341 = vmatprep.subr.mxu0 0.0
    %342 = vmatpush1.msra.mxu0 0.0
    %343 = vmatprep.subr.mxu0 0.0
    %344 = vmatpush1.msra.mxu0 0.0
    %345 = vmatprep.subr.mxu0 0.0
    %346 = vmatpush1.msra.mxu0 0.0
    %347 = vmatprep.subr.mxu0 0.0
    %348 = vmatpush1.msra.mxu0 0.0
    %349 = vmatprep.subr.mxu0 0.0
    %350 = vmatpush1.msra.mxu0 0.0
    %351 = vmatprep.subr.mxu0 0.0
    %352 = vmatpush1.msra.mxu0 0.0
    %353 = vmatprep.subr.mxu0 0.0
    %354 = vmatpush1.msra.mxu0 0.0
    %355 = vmatprep.subr.mxu0 0.0
    %356 = vmatpush1.msra.mxu0 0.0
    %357 = vmatprep.mubr.f32.mxu0 0.0
    %358 = vmatmul.mubr.f32.gmra.mrb[0].mxu0 %v291
    %v359 = vpop.f32.mrb[0].mxu0
    %v360 = vadd.f32 %v288, %v359
    %v361 = vpop.f32.mrb[0].mxu0
    %362 = vdwg.mxu0
    %v363 = vtanh.pop %v360
    %v364 = vrot.slane %v132, 3
    %v367 = vsel %vm136, %v363, 0
    %369 = vmatprep.subr.mxu0 0.0
    %370 = vmatpush1.msra.mxu0 %v46
    %371 = vmatprep.subr.mxu0 0.0
    %372 = vmatpush1.msra.mxu0 %v47
    %373 = vmatprep.subr.mxu0 0.0
    %374 = vmatpush1.msra.mxu0 %v48
    %375 = vmatprep.subr.mxu0 0.0
    %376 = vmatpush1.msra.mxu0 %v49
    %377 = vmatprep.subr.mxu0 0.0
    %378 = vmatpush1.msra.mxu0 0.0
    %379 = vmatprep.subr.mxu0 0.0
    %380 = vmatpush1.msra.mxu0 0.0
    %381 = vmatprep.subr.mxu0 0.0
    %382 = vmatpush1.msra.mxu0 0.0
    %383 = vmatprep.subr.mxu0 0.0
    %384 = vmatpush1.msra.mxu0 0.0
    %385 = vmatprep.subr.mxu0 0.0
    %386 = vmatpush1.msra.mxu0 0.0
    %387 = vmatprep.subr.mxu0 0.0
    %388 = vmatpush1.msra.mxu0 0.0
    %389 = vmatprep.subr.mxu0 0.0
    %390 = vmatpush1.msra.mxu0 0.0
    %391 = vmatprep.subr.mxu0 0.0
    %392 = vmatpush1.msra.mxu0 0.0
    %393 = vmatprep.subr.mxu0 0.0
    %394 = vmatpush1.msra.mxu0 0.0
    %395 = vmatprep.subr.mxu0 0.0
    %396 = vmatpush1.msra.mxu0 0.0
    %397 = vmatprep.subr.mxu0 0.0
    %398 = vmatpush1.msra.mxu0 0.0
    %399 = vmatprep.subr.mxu0 0.0
    %400 = vmatpush1.msra.mxu0 0.0
    %401 = vmatprep.subr.mxu0 0.0
    %402 = vmatpush1.msra.mxu0 0.0
    %403 = vmatprep.subr.mxu0 0.0
    %404 = vmatpush1.msra.mxu0 0.0
    %405 = vmatprep.subr.mxu0 0.0
    %406 = vmatpush1.msra.mxu0 0.0
    %407 = vmatprep.subr.mxu0 0.0
    %408 = vmatpush1.msra.mxu0 0.0
    %409 = vmatprep.subr.mxu0 0.0
    %410 = vmatpush1.msra.mxu0 0.0
    %411 = vmatprep.subr.mxu0 0.0
    %412 = vmatpush1.msra.mxu0 0.0
    %413 = vmatprep.subr.mxu0 0.0
    %414 = vmatpush1.msra.mxu0 0.0
    %415 = vmatprep.subr.mxu0 0.0
    %416 = vmatpush1.msra.mxu0 0.0
    %417 = vmatprep.subr.mxu0 0.0
    %418 = vmatpush1.msra.mxu0 0.0
    %419 = vmatprep.subr.mxu0 0.0
    %420 = vmatpush1.msra.mxu0 0.0
    %421 = vmatprep.subr.mxu0 0.0
    %422 = vmatpush1.msra.mxu0 0.0
    %423 = vmatprep.subr.mxu0 0.0
    %424 = vmatpush1.msra.mxu0 0.0
    %425 = vmatprep.subr.mxu0 0.0
    %426 = vmatpush1.msra.mxu0 0.0
    %427 = vmatprep.subr.mxu0 0.0
    %428 = vmatpush1.msra.mxu0 0.0
    %429 = vmatprep.subr.mxu0 0.0
    %430 = vmatpush1.msra.mxu0 0.0
    %431 = vmatprep.subr.mxu0 0.0
    %432 = vmatpush1.msra.mxu0 0.0
    %433 = vmatprep.mubr.f32.mxu0 0.0
    %434 = vmatmul.mubr.f32.gmra.mrb[0].mxu0 %v367
    %v435 = vpop.f32.mrb[0].mxu0
    %v436 = vadd.f32 %v364, %v435
    %v437 = vpop.f32.mrb[0].mxu0
    %438 = vdwg.mxu0
    %v439 = vtanh.pop %v436
    %v440 = vrot.slane %v132, 4
    %v443 = vsel %vm136, %v439, 0
    %445 = vmatprep.subr.mxu0 0.0
    %446 = vmatpush1.msra.mxu0 %v46
    %447 = vmatprep.subr.mxu0 0.0
    %448 = vmatpush1.msra.mxu0 %v47
    %449 = vmatprep.subr.mxu0 0.0
    %450 = vmatpush1.msra.mxu0 %v48
    %451 = vmatprep.subr.mxu0 0.0
    %452 = vmatpush1.msra.mxu0 %v49
    %453 = vmatprep.subr.mxu0 0.0
    %454 = vmatpush1.msra.mxu0 0.0
    %455 = vmatprep.subr.mxu0 0.0
    %456 = vmatpush1.msra.mxu0 0.0
    %457 = vmatprep.subr.mxu0 0.0
    %458 = vmatpush1.msra.mxu0 0.0
    %459 = vmatprep.subr.mxu0 0.0
    %460 = vmatpush1.msra.mxu0 0.0
    %461 = vmatprep.subr.mxu0 0.0
    %462 = vmatpush1.msra.mxu0 0.0
    %463 = vmatprep.subr.mxu0 0.0
    %464 = vmatpush1.msra.mxu0 0.0
    %465 = vmatprep.subr.mxu0 0.0
    %466 = vmatpush1.msra.mxu0 0.0
    %467 = vmatprep.subr.mxu0 0.0
    %468 = vmatpush1.msra.mxu0 0.0
    %469 = vmatprep.subr.mxu0 0.0
    %470 = vmatpush1.msra.mxu0 0.0
    %471 = vmatprep.subr.mxu0 0.0
    %472 = vmatpush1.msra.mxu0 0.0
    %473 = vmatprep.subr.mxu0 0.0
    %474 = vmatpush1.msra.mxu0 0.0
    %475 = vmatprep.subr.mxu0 0.0
    %476 = vmatpush1.msra.mxu0 0.0
    %477 = vmatprep.subr.mxu0 0.0
    %478 = vmatpush1.msra.mxu0 0.0
    %479 = vmatprep.subr.mxu0 0.0
    %480 = vmatpush1.msra.mxu0 0.0
    %481 = vmatprep.subr.mxu0 0.0
    %482 = vmatpush1.msra.mxu0 0.0
    %483 = vmatprep.subr.mxu0 0.0
    %484 = vmatpush1.msra.mxu0 0.0
    %485 = vmatprep.subr.mxu0 0.0
    %486 = vmatpush1.msra.mxu0 0.0
    %487 = vmatprep.subr.mxu0 0.0
    %488 = vmatpush1.msra.mxu0 0.0
    %489 = vmatprep.subr.mxu0 0.0
    %490 = vmatpush1.msra.mxu0 0.0
    %491 = vmatprep.subr.mxu0 0.0
    %492 = vmatpush1.msra.mxu0 0.0
    %493 = vmatprep.subr.mxu0 0.0
    %494 = vmatpush1.msra.mxu0 0.0
    %495 = vmatprep.subr.mxu0 0.0
    %496 = vmatpush1.msra.mxu0 0.0
    %497 = vmatprep.subr.mxu0 0.0
    %498 = vmatpush1.msra.mxu0 0.0
    %499 = vmatprep.subr.mxu0 0.0
    %500 = vmatpush1.msra.mxu0 0.0
    %501 = vmatprep.subr.mxu0 0.0
    %502 = vmatpush1.msra.mxu0 0.0
    %503 = vmatprep.subr.mxu0 0.0
    %504 = vmatpush1.msra.mxu0 0.0
    %505 = vmatprep.subr.mxu0 0.0
    %506 = vmatpush1.msra.mxu0 0.0
    %507 = vmatprep.subr.mxu0 0.0
    %508 = vmatpush1.msra.mxu0 0.0
    %509 = vmatprep.mubr.f32.mxu0 0.0
    %510 = vmatmul.mubr.f32.gmra.mrb[0].mxu0 %v443
    %v511 = vpop.f32.mrb[0].mxu0
    %v512 = vadd.f32 %v440, %v511
    %v513 = vpop.f32.mrb[0].mxu0
    %514 = vdwg.mxu0
    %v515 = vtanh.pop %v512
    %v516 = vrot.slane %v132, 5
    %v519 = vsel %vm136, %v515, 0
    %521 = vmatprep.subr.mxu0 0.0
    %522 = vmatpush1.msra.mxu0 %v46
    %523 = vmatprep.subr.mxu0 0.0
    %524 = vmatpush1.msra.mxu0 %v47
    %525 = vmatprep.subr.mxu0 0.0
    %526 = vmatpush1.msra.mxu0 %v48
    %527 = vmatprep.subr.mxu0 0.0
    %528 = vmatpush1.msra.mxu0 %v49
    %529 = vmatprep.subr.mxu0 0.0
    %530 = vmatpush1.msra.mxu0 0.0
    %531 = vmatprep.subr.mxu0 0.0
    %532 = vmatpush1.msra.mxu0 0.0
    %533 = vmatprep.subr.mxu0 0.0
    %534 = vmatpush1.msra.mxu0 0.0
    %535 = vmatprep.subr.mxu0 0.0
    %536 = vmatpush1.msra.mxu0 0.0
    %537 = vmatprep.subr.mxu0 0.0
    %538 = vmatpush1.msra.mxu0 0.0
    %539 = vmatprep.subr.mxu0 0.0
    %540 = vmatpush1.msra.mxu0 0.0
    %541 = vmatprep.subr.mxu0 0.0
    %542 = vmatpush1.msra.mxu0 0.0
    %543 = vmatprep.subr.mxu0 0.0
    %544 = vmatpush1.msra.mxu0 0.0
    %545 = vmatprep.subr.mxu0 0.0
    %546 = vmatpush1.msra.mxu0 0.0
    %547 = vmatprep.subr.mxu0 0.0
    %548 = vmatpush1.msra.mxu0 0.0
    %549 = vmatprep.subr.mxu0 0.0
    %550 = vmatpush1.msra.mxu0 0.0
    %551 = vmatprep.subr.mxu0 0.0
    %552 = vmatpush1.msra.mxu0 0.0
    %553 = vmatprep.subr.mxu0 0.0
    %554 = vmatpush1.msra.mxu0 0.0
    %555 = vmatprep.subr.mxu0 0.0
    %556 = vmatpush1.msra.mxu0 0.0
    %557 = vmatprep.subr.mxu0 0.0
    %558 = vmatpush1.msra.mxu0 0.0
    %559 = vmatprep.subr.mxu0 0.0
    %560 = vmatpush1.msra.mxu0 0.0
    %561 = vmatprep.subr.mxu0 0.0
    %562 = vmatpush1.msra.mxu0 0.0
    %563 = vmatprep.subr.mxu0 0.0
    %564 = vmatpush1.msra.mxu0 0.0
    %565 = vmatprep.subr.mxu0 0.0
    %566 = vmatpush1.msra.mxu0 0.0
    %567 = vmatprep.subr.mxu0 0.0
    %568 = vmatpush1.msra.mxu0 0.0
    %569 = vmatprep.subr.mxu0 0.0
    %570 = vmatpush1.msra.mxu0 0.0
    %571 = vmatprep.subr.mxu0 0.0
    %572 = vmatpush1.msra.mxu0 0.0
    %573 = vmatprep.subr.mxu0 0.0
    %574 = vmatpush1.msra.mxu0 0.0
    %575 = vmatprep.subr.mxu0 0.0
    %576 = vmatpush1.msra.mxu0 0.0
    %577 = vmatprep.subr.mxu0 0.0
    %578 = vmatpush1.msra.mxu0 0.0
    %579 = vmatprep.subr.mxu0 0.0
    %580 = vmatpush1.msra.mxu0 0.0
    %581 = vmatprep.subr.mxu0 0.0
    %582 = vmatpush1.msra.mxu0 0.0
    %583 = vmatprep.subr.mxu0 0.0
    %584 = vmatpush1.msra.mxu0 0.0
    %585 = vmatprep.mubr.f32.mxu0 0.0
    %586 = vmatmul.mubr.f32.gmra.mrb[0].mxu0 %v519
    %v587 = vpop.f32.mrb[0].mxu0
    %v588 = vadd.f32 %v516, %v587
    %v589 = vpop.f32.mrb[0].mxu0
    %590 = vdwg.mxu0
    %v591 = vtanh.pop %v588
    %v592 = vrot.slane %v132, 6
    %v595 = vsel %vm136, %v591, 0
    %597 = vmatprep.subr.mxu0 0.0
    %598 = vmatpush1.msra.mxu0 %v46
    %599 = vmatprep.subr.mxu0 0.0
    %600 = vmatpush1.msra.mxu0 %v47
    %601 = vmatprep.subr.mxu0 0.0
    %602 = vmatpush1.msra.mxu0 %v48
    %603 = vmatprep.subr.mxu0 0.0
    %604 = vmatpush1.msra.mxu0 %v49
    %605 = vmatprep.subr.mxu0 0.0
    %606 = vmatpush1.msra.mxu0 0.0
    %607 = vmatprep.subr.mxu0 0.0
    %608 = vmatpush1.msra.mxu0 0.0
    %609 = vmatprep.subr.mxu0 0.0
    %610 = vmatpush1.msra.mxu0 0.0
    %611 = vmatprep.subr.mxu0 0.0
    %612 = vmatpush1.msra.mxu0 0.0
    %613 = vmatprep.subr.mxu0 0.0
    %614 = vmatpush1.msra.mxu0 0.0
    %615 = vmatprep.subr.mxu0 0.0
    %616 = vmatpush1.msra.mxu0 0.0
    %617 = vmatprep.subr.mxu0 0.0
    %618 = vmatpush1.msra.mxu0 0.0
    %619 = vmatprep.subr.mxu0 0.0
    %620 = vmatpush1.msra.mxu0 0.0
    %621 = vmatprep.subr.mxu0 0.0
    %622 = vmatpush1.msra.mxu0 0.0
    %623 = vmatprep.subr.mxu0 0.0
    %624 = vmatpush1.msra.mxu0 0.0
    %625 = vmatprep.subr.mxu0 0.0
    %626 = vmatpush1.msra.mxu0 0.0
    %627 = vmatprep.subr.mxu0 0.0
    %628 = vmatpush1.msra.mxu0 0.0
    %629 = vmatprep.subr.mxu0 0.0
    %630 = vmatpush1.msra.mxu0 0.0
    %631 = vmatprep.subr.mxu0 0.0
    %632 = vmatpush1.msra.mxu0 0.0
    %633 = vmatprep.subr.mxu0 0.0
    %634 = vmatpush1.msra.mxu0 0.0
    %635 = vmatprep.subr.mxu0 0.0
    %636 = vmatpush1.msra.mxu0 0.0
    %637 = vmatprep.subr.mxu0 0.0
    %638 = vmatpush1.msra.mxu0 0.0
    %639 = vmatprep.subr.mxu0 0.0
    %640 = vmatpush1.msra.mxu0 0.0
    %641 = vmatprep.subr.mxu0 0.0
    %642 = vmatpush1.msra.mxu0 0.0
    %643 = vmatprep.subr.mxu0 0.0
    %644 = vmatpush1.msra.mxu0 0.0
    %645 = vmatprep.subr.mxu0 0.0
    %646 = vmatpush1.msra.mxu0 0.0
    %647 = vmatprep.subr.mxu0 0.0
    %648 = vmatpush1.msra.mxu0 0.0
    %649 = vmatprep.subr.mxu0 0.0
    %650 = vmatpush1.msra.mxu0 0.0
    %651 = vmatprep.subr.mxu0 0.0
    %652 = vmatpush1.msra.mxu0 0.0
    %653 = vmatprep.subr.mxu0 0.0
    %654 = vmatpush1.msra.mxu0 0.0
    %655 = vmatprep.subr.mxu0 0.0
    %656 = vmatpush1.msra.mxu0 0.0
    %657 = vmatprep.subr.mxu0 0.0
    %658 = vmatpush1.msra.mxu0 0.0
    %659 = vmatprep.subr.mxu0 0.0
    %660 = vmatpush1.msra.mxu0 0.0
    %661 = vmatprep.mubr.f32.mxu0 0.0
    %662 = vmatmul.mubr.f32.gmra.mrb[0].mxu0 %v595
    %v663 = vpop.f32.mrb[0].mxu0
    %v664 = vadd.f32 %v592, %v663
    %v665 = vpop.f32.mrb[0].mxu0
    %666 = vdwg.mxu0
    %v667 = vtanh.pop %v664
    %v668 = vrot.slane %v132, 7
    %v671 = vsel %vm136, %v667, 0
    %673 = vmatprep.subr.mxu0 0.0
    %674 = vmatpush1.msra.mxu0 %v46
    %675 = vmatprep.subr.mxu0 0.0
    %676 = vmatpush1.msra.mxu0 %v47
    %677 = vmatprep.subr.mxu0 0.0
    %678 = vmatpush1.msra.mxu0 %v48
    %679 = vmatprep.subr.mxu0 0.0
    %680 = vmatpush1.msra.mxu0 %v49
    %681 = vmatprep.subr.mxu0 0.0
    %682 = vmatpush1.msra.mxu0 0.0
    %683 = vmatprep.subr.mxu0 0.0
    %684 = vmatpush1.msra.mxu0 0.0
    %685 = vmatprep.subr.mxu0 0.0
    %686 = vmatpush1.msra.mxu0 0.0
    %687 = vmatprep.subr.mxu0 0.0
    %688 = vmatpush1.msra.mxu0 0.0
    %689 = vmatprep.subr.mxu0 0.0
    %690 = vmatpush1.msra.mxu0 0.0
    %691 = vmatprep.subr.mxu0 0.0
    %692 = vmatpush1.msra.mxu0 0.0
    %693 = vmatprep.subr.mxu0 0.0
    %694 = vmatpush1.msra.mxu0 0.0
    %695 = vmatprep.subr.mxu0 0.0
    %696 = vmatpush1.msra.mxu0 0.0
    %697 = vmatprep.subr.mxu0 0.0
    %698 = vmatpush1.msra.mxu0 0.0
    %699 = vmatprep.subr.mxu0 0.0
    %700 = vmatpush1.msra.mxu0 0.0
    %701 = vmatprep.subr.mxu0 0.0
    %702 = vmatpush1.msra.mxu0 0.0
    %703 = vmatprep.subr.mxu0 0.0
    %704 = vmatpush1.msra.mxu0 0.0
    %705 = vmatprep.subr.mxu0 0.0
    %706 = vmatpush1.msra.mxu0 0.0
    %707 = vmatprep.subr.mxu0 0.0
    %708 = vmatpush1.msra.mxu0 0.0
    %709 = vmatprep.subr.mxu0 0.0
    %710 = vmatpush1.msra.mxu0 0.0
    %711 = vmatprep.subr.mxu0 0.0
    %712 = vmatpush1.msra.mxu0 0.0
    %713 = vmatprep.subr.mxu0 0.0
    %714 = vmatpush1.msra.mxu0 0.0
    %715 = vmatprep.subr.mxu0 0.0
    %716 = vmatpush1.msra.mxu0 0.0
    %717 = vmatprep.subr.mxu0 0.0
    %718 = vmatpush1.msra.mxu0 0.0
    %719 = vmatprep.subr.mxu0 0.0
    %720 = vmatpush1.msra.mxu0 0.0
    %721 = vmatprep.subr.mxu0 0.0
    %722 = vmatpush1.msra.mxu0 0.0
    %723 = vmatprep.subr.mxu0 0.0
    %724 = vmatpush1.msra.mxu0 0.0
    %725 = vmatprep.subr.mxu0 0.0
    %726 = vmatpush1.msra.mxu0 0.0
    %727 = vmatprep.subr.mxu0 0.0
    %728 = vmatpush1.msra.mxu0 0.0
    %729 = vmatprep.subr.mxu0 0.0
    %730 = vmatpush1.msra.mxu0 0.0
    %731 = vmatprep.subr.mxu0 0.0
    %732 = vmatpush1.msra.mxu0 0.0
    %733 = vmatprep.subr.mxu0 0.0
    %734 = vmatpush1.msra.mxu0 0.0
    %735 = vmatprep.subr.mxu0 0.0
    %736 = vmatpush1.msra.mxu0 0.0
    %737 = vmatprep.mubr.f32.mxu0 0.0
    %738 = vmatmul.mubr.f32.gmra.mrb[0].mxu0 %v671
    %v739 = vpop.f32.mrb[0].mxu0
    %v740 = vadd.f32 %v668, %v739
    %v741 = vpop.f32.mrb[0].mxu0
    %742 = vdwg.mxu0
    %v743 = vtanh.pop %v740
    %vm744 = vcmask 253952
    %745 = vst.msk [vmem:[#allocation8] sm:$0x1] %vm744, %v743
    %v747 = vsel %vm136, %v743, 0
    %749 = vmatprep.subr.mxu0 0.0
    %750 = vmatpush1.msra.mxu0 %v51
    %751 = vmatprep.subr.mxu0 0.0
    %752 = vmatpush1.msra.mxu0 %v52
    %753 = vmatprep.subr.mxu0 0.0
    %754 = vmatpush1.msra.mxu0 %v53
    %755 = vmatprep.subr.mxu0 0.0
    %756 = vmatpush1.msra.mxu0 %v54
    %757 = vmatprep.subr.mxu0 0.0
    %758 = vmatpush1.msra.mxu0 0.0
    %759 = vmatprep.subr.mxu0 0.0
    %760 = vmatpush1.msra.mxu0 0.0
    %761 = vmatprep.subr.mxu0 0.0
    %762 = vmatpush1.msra.mxu0 0.0
    %763 = vmatprep.subr.mxu0 0.0
    %764 = vmatpush1.msra.mxu0 0.0
    %765 = vmatprep.subr.mxu0 0.0
    %766 = vmatpush1.msra.mxu0 0.0
    %767 = vmatprep.subr.mxu0 0.0
    %768 = vmatpush1.msra.mxu0 0.0
    %769 = vmatprep.subr.mxu0 0.0
    %770 = vmatpush1.msra.mxu0 0.0
    %771 = vmatprep.subr.mxu0 0.0
    %772 = vmatpush1.msra.mxu0 0.0
    %773 = vmatprep.subr.mxu0 0.0
    %774 = vmatpush1.msra.mxu0 0.0
    %775 = vmatprep.subr.mxu0 0.0
    %776 = vmatpush1.msra.mxu0 0.0
    %777 = vmatprep.subr.mxu0 0.0
    %778 = vmatpush1.msra.mxu0 0.0
    %779 = vmatprep.subr.mxu0 0.0
    %780 = vmatpush1.msra.mxu0 0.0
    %781 = vmatprep.subr.mxu0 0.0
    %782 = vmatpush1.msra.mxu0 0.0
    %783 = vmatprep.subr.mxu0 0.0
    %784 = vmatpush1.msra.mxu0 0.0
    %785 = vmatprep.subr.mxu0 0.0
    %786 = vmatpush1.msra.mxu0 0.0
    %787 = vmatprep.subr.mxu0 0.0
    %788 = vmatpush1.msra.mxu0 0.0
    %789 = vmatprep.subr.mxu0 0.0
    %790 = vmatpush1.msra.mxu0 0.0
    %791 = vmatprep.subr.mxu0 0.0
    %792 = vmatpush1.msra.mxu0 0.0
    %793 = vmatprep.subr.mxu0 0.0
    %794 = vmatpush1.msra.mxu0 0.0
    %795 = vmatprep.subr.mxu0 0.0
    %796 = vmatpush1.msra.mxu0 0.0
    %797 = vmatprep.subr.mxu0 0.0
    %798 = vmatpush1.msra.mxu0 0.0
    %799 = vmatprep.subr.mxu0 0.0
    %800 = vmatpush1.msra.mxu0 0.0
    %801 = vmatprep.subr.mxu0 0.0
    %802 = vmatpush1.msra.mxu0 0.0
    %803 = vmatprep.subr.mxu0 0.0
    %804 = vmatpush1.msra.mxu0 0.0
    %805 = vmatprep.subr.mxu0 0.0
    %806 = vmatpush1.msra.mxu0 0.0
    %807 = vmatprep.subr.mxu0 0.0
    %808 = vmatpush1.msra.mxu0 0.0
    %809 = vmatprep.subr.mxu0 0.0
    %810 = vmatpush1.msra.mxu0 0.0
    %811 = vmatprep.subr.mxu0 0.0
    %812 = vmatpush1.msra.mxu0 0.0
    %813 = vmatprep.mubr.f32.mxu0 0.0
    %814 = vmatmul.mubr.f32.gmra.mrb[0].mxu0 %v747
    %v815 = vpop.f32.mrb[0].mxu0
    %v816 = vadd.f32 %v55, %v815
    %v817 = vpop.f32.mrb[0].mxu0
    %818 = vdwg.mxu0
    %vm819 = vcmask 32768
    %v820 = vsel %vm819, %v816, -inf
    %821 = vmax.xlane.f32.xlu0 %v820
    %v822 = vpop.xlane.xlu0 %821
    %v823 = vsub.f32 %v816, %v822
    %v824 = vmul.f32 %v823, 1.442695
    %v825 = vpow.pop %v824
    %v826 = vsel %vm819, %v825, 0.0
    %827 = vadd.xlane.f32.xlu0 %v826
    %v828 = vpop.xlane.xlu0 %827
    %v829 = vlog2.pop %v828
    %v830 = vmul.f32 %v829, 0.6931472
    %v831 = vsub.f32 %v823, %v830
    %832 = vst.msk [vmem:[#allocation7] sm:$0x1] %vm819, %v831
    // Predicated region
    $region22: #{rnn_forward.1} parent=1 // pred_check
      _
    $region23: #{rnn_forward.1} parent=1 // pred_check_branch
      %834 = sbr.rel (0) target = $region25
    $region24: #{rnn_forward.1} parent=1 // pred_region
      %s836 = ssub.s32 16, 16
      %837 = vsyncadd [#allocation4], %s836
      %s839 = sshll.u32 [#allocation7], 4
      %s840 = int_to_ptr.vmem [resolvable:$true] %s839
      %842 = dma.vmem_to_hbm [thread:$0]  %s840, 16, %s3, [#allocation4]
    $region25: #{rnn_forward.1} parent=1 // pred_fallthru
      _
    // Predicated region
    $region26: #{rnn_forward.1} parent=1 // pred_check
      _
    $region27: #{rnn_forward.1} parent=1 // pred_check_branch
      %844 = sbr.rel (0) target = $region29
    $region28: #{rnn_forward.1} parent=1 // pred_region
      %s846 = ssub.s32 16, 16
      %847 = vsyncadd [#allocation9], %s846
      %s849 = sshll.u32 [#allocation8], 4
      %s850 = int_to_ptr.vmem [resolvable:$true] %s849
      %852 = dma.vmem_to_hbm [thread:$0]  %s850, 16, %s4, [#allocation9]
    $region29: #{rnn_forward.1} parent=1 // pred_fallthru
      _
    // Predicated region
    $region30: #{rnn_forward.1} parent=1 // pred_check
      _
    $region31: #{rnn_forward.1} parent=1 // pred_check_branch
      %854 = sbr.rel (0) target = $region33
    $region32: #{rnn_forward.1} parent=1 // pred_region
      %855 = dma.done [#allocation4], 16
    $region33: #{rnn_forward.1} parent=1 // pred_fallthru
      _
    // Predicated region
    $region34: #{rnn_forward.1} parent=1 // pred_check
      _
    $region35: #{rnn_forward.1} parent=1 // pred_check_branch
      %857 = sbr.rel (0) target = $region37
    $region36: #{rnn_forward.1} parent=1 // pred_region
      %858 = dma.done [#allocation9], 16
    $region37: #{rnn_forward.1} parent=1 // pred_fallthru
      _
    %859 = vsyncpa [#allocation3], 1
    %860 = vsyncpa [#allocation6], 1
    %861 = vsyncpa [#allocation4], 1
    %862 = vsyncpa [#allocation9], 1

</llo_original>
